<compile_context>
chip_gen: v7x
topology: tpu7x:2x2x1
jax: 0.10.0
libtpu: 0.0.40
codegen_flags: <defaults>
</compile_context>

<pallas_src>
import jax
import jax.numpy as jnp
from jax.experimental import pallas as pl
from jax.experimental.pallas import tpu as pltpu

_LANE_TILE = 128  # agent-tile width on the lane axis


def _round_up(x, m):
    return (x + m - 1) // m * m


def make_gru_module_2(eta_d: float, alpha: float):
    inv_eta_d = 1.0 / float(eta_d)
    alpha = float(alpha)

    def kernel(b_ref, x_ref, out_ref):
        # b_ref:   (1,) f32 scalar in SMEM (inverse temperature B)
        # x_ref:   (4, T, TN)  stacked [pi_tilda_c, pi_d, pi_p, pi_g]
        # out_ref: (3, 3, T, TN)  axis0 = result (X1,X2,X3), axis1 = source
        neg_two_b = -2.0 * b_ref[0]  # hoisted scalar: -2B

        # Source prices: d' = pi_tilda_c + pi_d / eta_d, p, g   (each (T, TN))
        xd = x_ref[0, :, :] + x_ref[1, :, :] * inv_eta_d
        xp = x_ref[2, :, :]
        xg = x_ref[3, :, :]

        def softmin3(a, b, c):
            # softmin(2B * x) over the 3 channels == softmax(-2B * x)
            na = neg_two_b * a
            nb = neg_two_b * b
            nc = neg_two_b * c
            m = jnp.maximum(jnp.maximum(na, nb), nc)
            ea = jnp.exp(na - m)
            eb = jnp.exp(nb - m)
            ec = jnp.exp(nc - m)
            # exact reciprocal: keeps the 1e-5 tolerance vs the reference
            inv_s = pl.reciprocal(ea + eb + ec, approx=False)
            return ea * inv_s, eb * inv_s, ec * inv_s

        # X1 = softmin(2B * X) -- store as soon as it is ready
        x1d, x1p, x1g = softmin3(xd, xp, xg)
        out_ref[0, 0, :, :] = x1d
        out_ref[0, 1, :, :] = x1p
        out_ref[0, 2, :, :] = x1g

        # X2 = softmin(2B * (X + alpha * X1))
        yd = xd + alpha * x1d
        yp = xp + alpha * x1p
        yg = xg + alpha * x1g
        x2d, x2p, x2g = softmin3(yd, yp, yg)
        out_ref[1, 0, :, :] = x2d
        out_ref[1, 1, :, :] = x2p
        out_ref[1, 2, :, :] = x2g

        # X3 = softmin(2B * (X + alpha * X1 + alpha * X2))
        zd = yd + alpha * x2d
        zp = yp + alpha * x2p
        zg = yg + alpha * x2g
        x3d, x3p, x3g = softmin3(zd, zp, zg)
        out_ref[2, 0, :, :] = x3d
        out_ref[2, 1, :, :] = x3p
        out_ref[2, 2, :, :] = x3g

    def forward(pi_tilda_c, pi_d, pi_p, pi_g, B):
        pi_tilda_c = jnp.asarray(pi_tilda_c, jnp.float32)
        pi_d = jnp.asarray(pi_d, jnp.float32)
        pi_p = jnp.asarray(pi_p, jnp.float32)
        pi_g = jnp.asarray(pi_g, jnp.float32)
        n, t = pi_tilda_c.shape

        tn = _LANE_TILE
        n_pad = _round_up(n, tn)

        # One stacked slab, agents on the lane (minor) axis, zero-padded to a
        # multiple of 128.  Padded columns compute harmless finite softmaxes
        # and are sliced off below.
        x = jnp.stack([pi_tilda_c, pi_d, pi_p, pi_g], axis=0)   # (4, n, t)
        x = jnp.transpose(x, (0, 2, 1))                          # (4, t, n)
        if n_pad != n:
            x = jnp.pad(x, ((0, 0), (0, 0), (0, n_pad - n)))
        b_arr = jnp.asarray([B], jnp.float32)

        grid = (n_pad // tn,)
        out = pl.pallas_call(
            kernel,
            out_shape=jax.ShapeDtypeStruct((3, 3, t, n_pad), jnp.float32),
            grid=grid,
            in_specs=[
                pl.BlockSpec(memory_space=pltpu.SMEM),               # B scalar
                pl.BlockSpec((4, t, tn), lambda i: (0, 0, i)),       # stacked prices
            ],
            out_specs=pl.BlockSpec((3, 3, t, tn), lambda i: (0, 0, 0, i)),
            compiler_params=pltpu.CompilerParams(
                dimension_semantics=("parallel",),   # megacore sharding on v7x
            ),
        )(b_arr, x)

        # Single fused relayout back to the PyTorch convention:
        # (3 results, 3 sources, t, n) -> (3, n, t, 3)
        outs = jnp.transpose(out[:, :, :, :n], (0, 3, 2, 1))
        return outs[0], outs[1], outs[2]

    return forward


def _reference(pi_tilda_c, pi_d, pi_p, pi_g, B, eta_d, alpha):
    # pure-JAX reference mirroring the PyTorch module
    X = jnp.stack([pi_tilda_c + pi_d / eta_d, pi_p, pi_g], axis=2)
    X1 = jax.nn.softmax(-2.0 * B * X, axis=2)
    X2 = jax.nn.softmax(-2.0 * B * (X + alpha * X1), axis=2)
    X3 = jax.nn.softmax(-2.0 * B * (X + alpha * X1 + alpha * X2), axis=2)
    return X1, X2, X3


if __name__ == "__main__":
    eta_d = 0.95
    alpha = 100.0
    B = 5.0

    n_agents, n_slots = 8, 24
    key = jax.random.PRNGKey(0)
    k1, k2, k3, k4 = jax.random.split(key, 4)
    pi_tilda_c = jax.random.uniform(k1, (n_agents, n_slots), jnp.float32, 0.0, 1.0)
    pi_d = jax.random.uniform(k2, (n_agents, n_slots), jnp.float32, 0.0, 1.0)
    pi_p = jax.random.uniform(k3, (n_agents, n_slots), jnp.float32, 0.0, 1.0)
    pi_g = jax.random.uniform(k4, (n_agents, n_slots), jnp.float32, 0.0, 1.0)

    fwd = make_gru_module_2(eta_d, alpha)
    X1, X2, X3 = fwd(pi_tilda_c, pi_d, pi_p, pi_g, B)
    jax.block_until_ready((X1, X2, X3))

    R1, R2, R3 = _reference(pi_tilda_c, pi_d, pi_p, pi_g, B, eta_d, alpha)
    assert X1.shape == (n_agents, n_slots, 3)
    assert X2.shape == (n_agents, n_slots, 3)
    assert X3.shape == (n_agents, n_slots, 3)
    assert jnp.allclose(X1, R1, atol=1e-5)
    assert jnp.allclose(X2, R2, atol=1e-5)
    assert jnp.allclose(X3, R3, atol=1e-5)

    print("KERNEL_OK")
</pallas_src>

<mosaic_0001>
module attributes {stable_mosaic.version = 11 : i64} {
  func.func @kernel(%arg0: i32, %arg1: memref<1xf32, #tpu.memory_space<smem>>, %arg2: memref<4x24x128xf32, #tpu.memory_space<vmem>>, %arg3: memref<3x3x24x128xf32, #tpu.memory_space<vmem>>) attributes {dimension_semantics = [#tpu.dimension_semantics<parallel>], iteration_bounds = array<i64: 1>, scalar_prefetch = 0 : i64, scratch_operands = 0 : i64, tpu.core_type = #tpu.core_type<tc>, window_params = [{transform_indices = @transform_0, window_bounds = array<i64: 1>}, {transform_indices = @transform_1, window_bounds = array<i64: 4, 24, 128>}, {transform_indices = @transform_2, window_bounds = array<i64: 3, 3, 24, 128>}]} {
    %c0 = arith.constant 0 : index
    %0 = memref.load %arg1[%c0] : memref<1xf32, #tpu.memory_space<smem>>
    %cst = arith.constant -2.000000e+00 : f32
    %1 = arith.mulf %cst, %0 : f32
    %c0_0 = arith.constant 0 : index
    %c0_1 = arith.constant 0 : index
    %c0_2 = arith.constant 0 : index
    %2 = vector.load %arg2[%c0_0, %c0_1, %c0_2] : memref<4x24x128xf32, #tpu.memory_space<vmem>>, vector<1x24x128xf32>
    %3 = vector.shape_cast %2 : vector<1x24x128xf32> to vector<24x128xf32>
    %c1 = arith.constant 1 : index
    %c0_3 = arith.constant 0 : index
    %c0_4 = arith.constant 0 : index
    %4 = vector.load %arg2[%c1, %c0_3, %c0_4] : memref<4x24x128xf32, #tpu.memory_space<vmem>>, vector<1x24x128xf32>
    %5 = vector.shape_cast %4 : vector<1x24x128xf32> to vector<24x128xf32>
    %cst_5 = arith.constant 1.05263162 : f32
    %6 = vector.broadcast %cst_5 : f32 to vector<24x128xf32>
    %7 = arith.mulf %5, %6 : vector<24x128xf32>
    %8 = arith.addf %3, %7 : vector<24x128xf32>
    %c2 = arith.constant 2 : index
    %c0_6 = arith.constant 0 : index
    %c0_7 = arith.constant 0 : index
    %9 = vector.load %arg2[%c2, %c0_6, %c0_7] : memref<4x24x128xf32, #tpu.memory_space<vmem>>, vector<1x24x128xf32>
    %10 = vector.shape_cast %9 : vector<1x24x128xf32> to vector<24x128xf32>
    %c3 = arith.constant 3 : index
    %c0_8 = arith.constant 0 : index
    %c0_9 = arith.constant 0 : index
    %11 = vector.load %arg2[%c3, %c0_8, %c0_9] : memref<4x24x128xf32, #tpu.memory_space<vmem>>, vector<1x24x128xf32>
    %12 = vector.shape_cast %11 : vector<1x24x128xf32> to vector<24x128xf32>
    %13 = vector.broadcast %1 : f32 to vector<24x128xf32>
    %14 = arith.mulf %13, %8 : vector<24x128xf32>
    %15 = vector.broadcast %1 : f32 to vector<24x128xf32>
    %16 = arith.mulf %15, %10 : vector<24x128xf32>
    %17 = vector.broadcast %1 : f32 to vector<24x128xf32>
    %18 = arith.mulf %17, %12 : vector<24x128xf32>
    %19 = arith.maximumf %14, %16 : vector<24x128xf32>
    %20 = arith.maximumf %19, %18 : vector<24x128xf32>
    %21 = arith.subf %14, %20 : vector<24x128xf32>
    %22 = math.exp %21 : vector<24x128xf32>
    %23 = arith.subf %16, %20 : vector<24x128xf32>
    %24 = math.exp %23 : vector<24x128xf32>
    %25 = arith.subf %18, %20 : vector<24x128xf32>
    %26 = math.exp %25 : vector<24x128xf32>
    %27 = arith.addf %22, %24 : vector<24x128xf32>
    %28 = arith.addf %27, %26 : vector<24x128xf32>
    %29 = tpu.reciprocal %28 : vector<24x128xf32> -> vector<24x128xf32>
    %30 = arith.mulf %22, %29 : vector<24x128xf32>
    %31 = arith.mulf %24, %29 : vector<24x128xf32>
    %32 = arith.mulf %26, %29 : vector<24x128xf32>
    %c0_10 = arith.constant 0 : index
    %c0_11 = arith.constant 0 : index
    %c0_12 = arith.constant 0 : index
    %c0_13 = arith.constant 0 : index
    %33 = vector.load %arg3[%c0_10, %c0_11, %c0_12, %c0_13] : memref<3x3x24x128xf32, #tpu.memory_space<vmem>>, vector<1x1x24x128xf32>
    %34 = vector.shape_cast %33 : vector<1x1x24x128xf32> to vector<24x128xf32>
    %35 = vector.shape_cast %30 : vector<24x128xf32> to vector<1x1x24x128xf32>
    tpu.vector_store %arg3[%c0_10, %c0_11, %c0_12, %c0_13], %35 {strides = array<i32>} : memref<3x3x24x128xf32, #tpu.memory_space<vmem>>, vector<1x1x24x128xf32>,
    %c0_14 = arith.constant 0 : index
    %c1_15 = arith.constant 1 : index
    %c0_16 = arith.constant 0 : index
    %c0_17 = arith.constant 0 : index
    %36 = vector.load %arg3[%c0_14, %c1_15, %c0_16, %c0_17] : memref<3x3x24x128xf32, #tpu.memory_space<vmem>>, vector<1x1x24x128xf32>
    %37 = vector.shape_cast %36 : vector<1x1x24x128xf32> to vector<24x128xf32>
    %38 = vector.shape_cast %31 : vector<24x128xf32> to vector<1x1x24x128xf32>
    tpu.vector_store %arg3[%c0_14, %c1_15, %c0_16, %c0_17], %38 {strides = array<i32>} : memref<3x3x24x128xf32, #tpu.memory_space<vmem>>, vector<1x1x24x128xf32>,
    %c0_18 = arith.constant 0 : index
    %c2_19 = arith.constant 2 : index
    %c0_20 = arith.constant 0 : index
    %c0_21 = arith.constant 0 : index
    %39 = vector.load %arg3[%c0_18, %c2_19, %c0_20, %c0_21] : memref<3x3x24x128xf32, #tpu.memory_space<vmem>>, vector<1x1x24x128xf32>
    %40 = vector.shape_cast %39 : vector<1x1x24x128xf32> to vector<24x128xf32>
    %41 = vector.shape_cast %32 : vector<24x128xf32> to vector<1x1x24x128xf32>
    tpu.vector_store %arg3[%c0_18, %c2_19, %c0_20, %c0_21], %41 {strides = array<i32>} : memref<3x3x24x128xf32, #tpu.memory_space<vmem>>, vector<1x1x24x128xf32>,
    %cst_22 = arith.constant 1.000000e+02 : f32
    %42 = vector.broadcast %cst_22 : f32 to vector<24x128xf32>
    %43 = arith.mulf %42, %30 : vector<24x128xf32>
    %44 = arith.addf %8, %43 : vector<24x128xf32>
    %cst_23 = arith.constant 1.000000e+02 : f32
    %45 = vector.broadcast %cst_23 : f32 to vector<24x128xf32>
    %46 = arith.mulf %45, %31 : vector<24x128xf32>
    %47 = arith.addf %10, %46 : vector<24x128xf32>
    %cst_24 = arith.constant 1.000000e+02 : f32
    %48 = vector.broadcast %cst_24 : f32 to vector<24x128xf32>
    %49 = arith.mulf %48, %32 : vector<24x128xf32>
    %50 = arith.addf %12, %49 : vector<24x128xf32>
    %51 = vector.broadcast %1 : f32 to vector<24x128xf32>
    %52 = arith.mulf %51, %44 : vector<24x128xf32>
    %53 = vector.broadcast %1 : f32 to vector<24x128xf32>
    %54 = arith.mulf %53, %47 : vector<24x128xf32>
    %55 = vector.broadcast %1 : f32 to vector<24x128xf32>
    %56 = arith.mulf %55, %50 : vector<24x128xf32>
    %57 = arith.maximumf %52, %54 : vector<24x128xf32>
    %58 = arith.maximumf %57, %56 : vector<24x128xf32>
    %59 = arith.subf %52, %58 : vector<24x128xf32>
    %60 = math.exp %59 : vector<24x128xf32>
    %61 = arith.subf %54, %58 : vector<24x128xf32>
    %62 = math.exp %61 : vector<24x128xf32>
    %63 = arith.subf %56, %58 : vector<24x128xf32>
    %64 = math.exp %63 : vector<24x128xf32>
    %65 = arith.addf %60, %62 : vector<24x128xf32>
    %66 = arith.addf %65, %64 : vector<24x128xf32>
    %67 = tpu.reciprocal %66 : vector<24x128xf32> -> vector<24x128xf32>
    %68 = arith.mulf %60, %67 : vector<24x128xf32>
    %69 = arith.mulf %62, %67 : vector<24x128xf32>
    %70 = arith.mulf %64, %67 : vector<24x128xf32>
    %c1_25 = arith.constant 1 : index
    %c0_26 = arith.constant 0 : index
    %c0_27 = arith.constant 0 : index
    %c0_28 = arith.constant 0 : index
    %71 = vector.load %arg3[%c1_25, %c0_26, %c0_27, %c0_28] : memref<3x3x24x128xf32, #tpu.memory_space<vmem>>, vector<1x1x24x128xf32>
    %72 = vector.shape_cast %71 : vector<1x1x24x128xf32> to vector<24x128xf32>
    %73 = vector.shape_cast %68 : vector<24x128xf32> to vector<1x1x24x128xf32>
    tpu.vector_store %arg3[%c1_25, %c0_26, %c0_27, %c0_28], %73 {strides = array<i32>} : memref<3x3x24x128xf32, #tpu.memory_space<vmem>>, vector<1x1x24x128xf32>,
    %c1_29 = arith.constant 1 : index
    %c1_30 = arith.constant 1 : index
    %c0_31 = arith.constant 0 : index
    %c0_32 = arith.constant 0 : index
    %74 = vector.load %arg3[%c1_29, %c1_30, %c0_31, %c0_32] : memref<3x3x24x128xf32, #tpu.memory_space<vmem>>, vector<1x1x24x128xf32>
    %75 = vector.shape_cast %74 : vector<1x1x24x128xf32> to vector<24x128xf32>
    %76 = vector.shape_cast %69 : vector<24x128xf32> to vector<1x1x24x128xf32>
    tpu.vector_store %arg3[%c1_29, %c1_30, %c0_31, %c0_32], %76 {strides = array<i32>} : memref<3x3x24x128xf32, #tpu.memory_space<vmem>>, vector<1x1x24x128xf32>,
    %c1_33 = arith.constant 1 : index
    %c2_34 = arith.constant 2 : index
    %c0_35 = arith.constant 0 : index
    %c0_36 = arith.constant 0 : index
    %77 = vector.load %arg3[%c1_33, %c2_34, %c0_35, %c0_36] : memref<3x3x24x128xf32, #tpu.memory_space<vmem>>, vector<1x1x24x128xf32>
    %78 = vector.shape_cast %77 : vector<1x1x24x128xf32> to vector<24x128xf32>
    %79 = vector.shape_cast %70 : vector<24x128xf32> to vector<1x1x24x128xf32>
    tpu.vector_store %arg3[%c1_33, %c2_34, %c0_35, %c0_36], %79 {strides = array<i32>} : memref<3x3x24x128xf32, #tpu.memory_space<vmem>>, vector<1x1x24x128xf32>,
    %cst_37 = arith.constant 1.000000e+02 : f32
    %80 = vector.broadcast %cst_37 : f32 to vector<24x128xf32>
    %81 = arith.mulf %80, %68 : vector<24x128xf32>
    %82 = arith.addf %44, %81 : vector<24x128xf32>
    %cst_38 = arith.constant 1.000000e+02 : f32
    %83 = vector.broadcast %cst_38 : f32 to vector<24x128xf32>
    %84 = arith.mulf %83, %69 : vector<24x128xf32>
    %85 = arith.addf %47, %84 : vector<24x128xf32>
    %cst_39 = arith.constant 1.000000e+02 : f32
    %86 = vector.broadcast %cst_39 : f32 to vector<24x128xf32>
    %87 = arith.mulf %86, %70 : vector<24x128xf32>
    %88 = arith.addf %50, %87 : vector<24x128xf32>
    %89 = vector.broadcast %1 : f32 to vector<24x128xf32>
    %90 = arith.mulf %89, %82 : vector<24x128xf32>
    %91 = vector.broadcast %1 : f32 to vector<24x128xf32>
    %92 = arith.mulf %91, %85 : vector<24x128xf32>
    %93 = vector.broadcast %1 : f32 to vector<24x128xf32>
    %94 = arith.mulf %93, %88 : vector<24x128xf32>
    %95 = arith.maximumf %90, %92 : vector<24x128xf32>
    %96 = arith.maximumf %95, %94 : vector<24x128xf32>
    %97 = arith.subf %90, %96 : vector<24x128xf32>
    %98 = math.exp %97 : vector<24x128xf32>
    %99 = arith.subf %92, %96 : vector<24x128xf32>
    %100 = math.exp %99 : vector<24x128xf32>
    %101 = arith.subf %94, %96 : vector<24x128xf32>
    %102 = math.exp %101 : vector<24x128xf32>
    %103 = arith.addf %98, %100 : vector<24x128xf32>
    %104 = arith.addf %103, %102 : vector<24x128xf32>
    %105 = tpu.reciprocal %104 : vector<24x128xf32> -> vector<24x128xf32>
    %106 = arith.mulf %98, %105 : vector<24x128xf32>
    %107 = arith.mulf %100, %105 : vector<24x128xf32>
    %108 = arith.mulf %102, %105 : vector<24x128xf32>
    %c2_40 = arith.constant 2 : index
    %c0_41 = arith.constant 0 : index
    %c0_42 = arith.constant 0 : index
    %c0_43 = arith.constant 0 : index
    %109 = vector.load %arg3[%c2_40, %c0_41, %c0_42, %c0_43] : memref<3x3x24x128xf32, #tpu.memory_space<vmem>>, vector<1x1x24x128xf32>
    %110 = vector.shape_cast %109 : vector<1x1x24x128xf32> to vector<24x128xf32>
    %111 = vector.shape_cast %106 : vector<24x128xf32> to vector<1x1x24x128xf32>
    tpu.vector_store %arg3[%c2_40, %c0_41, %c0_42, %c0_43], %111 {strides = array<i32>} : memref<3x3x24x128xf32, #tpu.memory_space<vmem>>, vector<1x1x24x128xf32>,
    %c2_44 = arith.constant 2 : index
    %c1_45 = arith.constant 1 : index
    %c0_46 = arith.constant 0 : index
    %c0_47 = arith.constant 0 : index
    %112 = vector.load %arg3[%c2_44, %c1_45, %c0_46, %c0_47] : memref<3x3x24x128xf32, #tpu.memory_space<vmem>>, vector<1x1x24x128xf32>
    %113 = vector.shape_cast %112 : vector<1x1x24x128xf32> to vector<24x128xf32>
    %114 = vector.shape_cast %107 : vector<24x128xf32> to vector<1x1x24x128xf32>
    tpu.vector_store %arg3[%c2_44, %c1_45, %c0_46, %c0_47], %114 {strides = array<i32>} : memref<3x3x24x128xf32, #tpu.memory_space<vmem>>, vector<1x1x24x128xf32>,
    %c2_48 = arith.constant 2 : index
    %c2_49 = arith.constant 2 : index
    %c0_50 = arith.constant 0 : index
    %c0_51 = arith.constant 0 : index
    %115 = vector.load %arg3[%c2_48, %c2_49, %c0_50, %c0_51] : memref<3x3x24x128xf32, #tpu.memory_space<vmem>>, vector<1x1x24x128xf32>
    %116 = vector.shape_cast %115 : vector<1x1x24x128xf32> to vector<24x128xf32>
    %117 = vector.shape_cast %108 : vector<24x128xf32> to vector<1x1x24x128xf32>
    tpu.vector_store %arg3[%c2_48, %c2_49, %c0_50, %c0_51], %117 {strides = array<i32>} : memref<3x3x24x128xf32, #tpu.memory_space<vmem>>, vector<1x1x24x128xf32>,
    return
  }
  func.func @transform_0(%arg0: i32) -> i32 {
    %c0_i32 = arith.constant 0 : i32
    %c0_i32_0 = arith.constant 0 : i32
    return %c0_i32 : i32
  }
  func.func @transform_1(%arg0: i32) -> (i32, i32, i32) {
    %c0_i32 = arith.constant 0 : i32
    %c0_i32_0 = arith.constant 0 : i32
    %c0_i32_1 = arith.constant 0 : i32
    return %c0_i32, %c0_i32_0, %arg0 : i32, i32, i32
  }
  func.func @transform_2(%arg0: i32) -> (i32, i32, i32, i32) {
    %c0_i32 = arith.constant 0 : i32
    %c0_i32_0 = arith.constant 0 : i32
    %c0_i32_1 = arith.constant 0 : i32
    %c0_i32_2 = arith.constant 0 : i32
    return %c0_i32, %c0_i32_0, %c0_i32_1, %arg0 : i32, i32, i32, i32
  }
}

</mosaic_0001>

<llo_original>
// kernel: tpu_custom_call.1
$region0: #{tpu_custom_call.1}
  #allocation0 [shape = 'u32[]', space=smem, size = 0x4, offset = 0x4, fixed_abs, tag = 'smem constant byte address 0x4 - core index']
  #allocation1 [shape = 'u32[144,128]{1,0:T(1,128)}', space=vmem, size = 0x12000, scoped, tag = 'internal scratch']
  #allocation2 [shape = 'f32[1]{0:T(128)S(6)}', space=smem, size = 0x200, scoped, tag = 'scoped memory for tpu_custom_call.1']
  %s0 = inlined_call_operand.<no memory space> [shape: f32[1], index: 0, kind: input, shape index: {}]
  %s1 = inlined_call_operand.hbm [shape: f32[4,24,128], index: 1, kind: input, shape index: {}]
  %s2 = inlined_call_operand.hbm [shape: f32[3,3,24,128], index: 2, kind: output, shape index: {}]
  %s3 = sld [smem:[#allocation0]]
  $region22: #{tpu_custom_call.1} parent=0
    _
  %s5 = ssub.s32 1, %s3
  %s6 = scalar_select 0, %s5, %s3
  %7 = sst [smem:[#allocation2]] %s0
  $region1: #{tpu_custom_call.1} parent=0
    #allocation3 [shape = 'u8[49152]{0}', space=vmem, size = 0xc000, scoped, tag = 'input window, operand 1, single buffered']
    #allocation4 [shape = 's32[1]{0}', space=sflag, size = 0x4, scoped, tag = 'scoped memory for tpu_custom_call.1']
    #allocation5 [shape = 's32[1]{0}', space=sflag, size = 0x4, scoped, tag = 'scoped memory for tpu_custom_call.1']
    #allocation6 [shape = 'u8[110592]{0}', space=vmem, size = 0x1b000, scoped, tag = 'output window, operand 0, single buffered']
    %8 = vsyncpa [#allocation4], 0
    %9 = vsyncpa [#allocation5], 0
    // Predicated region
    $region2: #{tpu_custom_call.1} parent=1 // pred_check
      _
    $region3: #{tpu_custom_call.1} parent=1 // pred_check_branch
      %11 = sbr.rel (0) target = $region5
    $region4: #{tpu_custom_call.1} parent=1 // pred_region
      _
    $region5: #{tpu_custom_call.1} parent=1 // pred_fallthru
      _
    // Predicated region
    $region6: #{tpu_custom_call.1} parent=1 // pred_check
      _
    $region7: #{tpu_custom_call.1} parent=1 // pred_check_branch
      %13 = sbr.rel (0) target = $region9
    $region8: #{tpu_custom_call.1} parent=1 // pred_region
      %s15 = ssub.s32 1536, 1536
      %16 = vsyncadd [#allocation4], %s15
      %s17 = sshll.u32 [#allocation3], 4
      %s18 = int_to_ptr.vmem [resolvable:$true] %s17
      %23 = dma.hbm_to_vmem [thread:$0]  %s1, 1536, %s18, [#allocation4], 128, 128, 8
    $region9: #{tpu_custom_call.1} parent=1 // pred_fallthru
      _
    // Predicated region
    $region10: #{tpu_custom_call.1} parent=1 // pred_check
      _
    $region11: #{tpu_custom_call.1} parent=1 // pred_check_branch
      %25 = sbr.rel (0) target = $region13
    $region12: #{tpu_custom_call.1} parent=1 // pred_region
      %26 = dma.done [#allocation4], 1536
    $region13: #{tpu_custom_call.1} parent=1 // pred_fallthru
      _
    %s27 = sld [smem:[#allocation2]]
    %s28 = smul.f32 %s27, -2.0
    %v29 = vld [vmem:[#allocation3] sm:$0xff]
    %v30 = vld [vmem:[#allocation3 + $0x8] sm:$0xff]
    %v31 = vld [vmem:[#allocation3 + $0x10] sm:$0xff]
    %s32 = scalar_lea.vmem [#allocation3], 24
    %v33 = vld [vmem:[%s32] sm:$0xff]
    %v34 = vld [vmem:[%s32 + $0x8] sm:$0xff]
    %v35 = vld [vmem:[%s32 + $0x10] sm:$0xff]
    %v36 = vmul.f32 %v33, 1.0526316
    %v37 = vmul.f32 %v34, 1.0526316
    %v38 = vmul.f32 %v35, 1.0526316
    %v39 = vadd.f32 %v29, %v36
    %v40 = vadd.f32 %v30, %v37
    %v41 = vadd.f32 %v31, %v38
    %s42 = scalar_lea.vmem [#allocation3], 48
    %v43 = vld [vmem:[%s42] sm:$0xff]
    %v44 = vld [vmem:[%s42 + $0x8] sm:$0xff]
    %v45 = vld [vmem:[%s42 + $0x10] sm:$0xff]
    %s46 = scalar_lea.vmem [#allocation3], 72
    %v47 = vld [vmem:[%s46] sm:$0xff]
    %v48 = vld [vmem:[%s46 + $0x8] sm:$0xff]
    %v49 = vld [vmem:[%s46 + $0x10] sm:$0xff]
    %v50 = vstv %s28
    %v51 = vmul.f32 %v50, %v39
    %v52 = vmul.f32 %v50, %v40
    %v53 = vmul.f32 %v50, %v41
    %v54 = vmul.f32 %v50, %v43
    %v55 = vmul.f32 %v50, %v44
    %v56 = vmul.f32 %v50, %v45
    %v57 = vmul.f32 %v50, %v47
    %v58 = vmul.f32 %v50, %v48
    %v59 = vmul.f32 %v50, %v49
    %v60 = vmax.f32 %v51, %v54
    %v61 = vmax.f32 %v52, %v55
    %v62 = vmax.f32 %v53, %v56
    %v63 = vmax.f32 %v60, %v57
    %v64 = vmax.f32 %v61, %v58
    %v65 = vmax.f32 %v62, %v59
    %v66 = vsub.f32 %v51, %v63
    %v67 = vsub.f32 %v52, %v64
    %v68 = vsub.f32 %v53, %v65
    %v69 = vmul.f32 %v66, 1.442695
    %v70 = vpow.pop %v69
    %v71 = vmul.f32 %v67, 1.442695
    %v72 = vpow.pop %v71
    %v73 = vmul.f32 %v68, 1.442695
    %v74 = vpow.pop %v73
    %v75 = vsub.f32 %v54, %v63
    %v76 = vsub.f32 %v55, %v64
    %v77 = vsub.f32 %v56, %v65
    %v78 = vmul.f32 %v75, 1.442695
    %v79 = vpow.pop %v78
    %v80 = vmul.f32 %v76, 1.442695
    %v81 = vpow.pop %v80
    %v82 = vmul.f32 %v77, 1.442695
    %v83 = vpow.pop %v82
    %v84 = vsub.f32 %v57, %v63
    %v85 = vsub.f32 %v58, %v64
    %v86 = vsub.f32 %v59, %v65
    %v87 = vmul.f32 %v84, 1.442695
    %v88 = vpow.pop %v87
    %v89 = vmul.f32 %v85, 1.442695
    %v90 = vpow.pop %v89
    %v91 = vmul.f32 %v86, 1.442695
    %v92 = vpow.pop %v91
    %v93 = vadd.f32 %v70, %v79
    %v94 = vadd.f32 %v72, %v81
    %v95 = vadd.f32 %v74, %v83
    %v96 = vadd.f32 %v93, %v88
    %v97 = vadd.f32 %v94, %v90
    %v98 = vadd.f32 %v95, %v92
    %v99 = vrcp.pop %v96
    %v100 = vrcp.pop %v97
    %v101 = vrcp.pop %v98
    %v102 = vmul.f32 %v70, %v99
    %v103 = vmul.f32 %v72, %v100
    %v104 = vmul.f32 %v74, %v101
    %v105 = vmul.f32 %v79, %v99
    %v106 = vmul.f32 %v81, %v100
    %v107 = vmul.f32 %v83, %v101
    %v108 = vmul.f32 %v88, %v99
    %v109 = vmul.f32 %v90, %v100
    %v110 = vmul.f32 %v92, %v101
    %111 = vst [vmem:[#allocation6] sm:$0xff] %v102
    %112 = vst [vmem:[#allocation6 + $0x8] sm:$0xff] %v103
    %113 = vst [vmem:[#allocation6 + $0x10] sm:$0xff] %v104
    %s114 = scalar_lea.vmem [#allocation6], 24
    %115 = vst [vmem:[%s114] sm:$0xff] %v105
    %116 = vst [vmem:[%s114 + $0x8] sm:$0xff] %v106
    %117 = vst [vmem:[%s114 + $0x10] sm:$0xff] %v107
    %s118 = scalar_lea.vmem [#allocation6], 48
    %119 = vst [vmem:[%s118] sm:$0xff] %v108
    %120 = vst [vmem:[%s118 + $0x8] sm:$0xff] %v109
    %121 = vst [vmem:[%s118 + $0x10] sm:$0xff] %v110
    %v122 = vmul.f32 %v102, 100.0
    %v123 = vmul.f32 %v103, 100.0
    %v124 = vmul.f32 %v104, 100.0
    %v125 = vadd.f32 %v39, %v122
    %v126 = vadd.f32 %v40, %v123
    %v127 = vadd.f32 %v41, %v124
    %v128 = vmul.f32 %v105, 100.0
    %v129 = vmul.f32 %v106, 100.0
    %v130 = vmul.f32 %v107, 100.0
    %v131 = vadd.f32 %v43, %v128
    %v132 = vadd.f32 %v44, %v129
    %v133 = vadd.f32 %v45, %v130
    %v134 = vmul.f32 %v108, 100.0
    %v135 = vmul.f32 %v109, 100.0
    %v136 = vmul.f32 %v110, 100.0
    %v137 = vadd.f32 %v47, %v134
    %v138 = vadd.f32 %v48, %v135
    %v139 = vadd.f32 %v49, %v136
    %v140 = vmul.f32 %v50, %v125
    %v141 = vmul.f32 %v50, %v126
    %v142 = vmul.f32 %v50, %v127
    %v143 = vmul.f32 %v50, %v131
    %v144 = vmul.f32 %v50, %v132
    %v145 = vmul.f32 %v50, %v133
    %v146 = vmul.f32 %v50, %v137
    %v147 = vmul.f32 %v50, %v138
    %v148 = vmul.f32 %v50, %v139
    %v149 = vmax.f32 %v140, %v143
    %v150 = vmax.f32 %v141, %v144
    %v151 = vmax.f32 %v142, %v145
    %v152 = vmax.f32 %v149, %v146
    %v153 = vmax.f32 %v150, %v147
    %v154 = vmax.f32 %v151, %v148
    %v155 = vsub.f32 %v140, %v152
    %v156 = vsub.f32 %v141, %v153
    %v157 = vsub.f32 %v142, %v154
    %v158 = vmul.f32 %v155, 1.442695
    %v159 = vpow.pop %v158
    %v160 = vmul.f32 %v156, 1.442695
    %v161 = vpow.pop %v160
    %v162 = vmul.f32 %v157, 1.442695
    %v163 = vpow.pop %v162
    %v164 = vsub.f32 %v143, %v152
    %v165 = vsub.f32 %v144, %v153
    %v166 = vsub.f32 %v145, %v154
    %v167 = vmul.f32 %v164, 1.442695
    %v168 = vpow.pop %v167
    %v169 = vmul.f32 %v165, 1.442695
    %v170 = vpow.pop %v169
    %v171 = vmul.f32 %v166, 1.442695
    %v172 = vpow.pop %v171
    %v173 = vsub.f32 %v146, %v152
    %v174 = vsub.f32 %v147, %v153
    %v175 = vsub.f32 %v148, %v154
    %v176 = vmul.f32 %v173, 1.442695
    %v177 = vpow.pop %v176
    %v178 = vmul.f32 %v174, 1.442695
    %v179 = vpow.pop %v178
    %v180 = vmul.f32 %v175, 1.442695
    %v181 = vpow.pop %v180
    %v182 = vadd.f32 %v159, %v168
    %v183 = vadd.f32 %v161, %v170
    %v184 = vadd.f32 %v163, %v172
    %v185 = vadd.f32 %v182, %v177
    %v186 = vadd.f32 %v183, %v179
    %v187 = vadd.f32 %v184, %v181
    %v188 = vrcp.pop %v185
    %v189 = vrcp.pop %v186
    %v190 = vrcp.pop %v187
    %v191 = vmul.f32 %v159, %v188
    %v192 = vmul.f32 %v161, %v189
    %v193 = vmul.f32 %v163, %v190
    %v194 = vmul.f32 %v168, %v188
    %v195 = vmul.f32 %v170, %v189
    %v196 = vmul.f32 %v172, %v190
    %v197 = vmul.f32 %v177, %v188
    %v198 = vmul.f32 %v179, %v189
    %v199 = vmul.f32 %v181, %v190
    %s200 = scalar_lea.vmem [#allocation6], 72
    %201 = vst [vmem:[%s200] sm:$0xff] %v191
    %202 = vst [vmem:[%s200 + $0x8] sm:$0xff] %v192
    %203 = vst [vmem:[%s200 + $0x10] sm:$0xff] %v193
    %s204 = scalar_lea.vmem [#allocation6], 96
    %205 = vst [vmem:[%s204] sm:$0xff] %v194
    %206 = vst [vmem:[%s204 + $0x8] sm:$0xff] %v195
    %207 = vst [vmem:[%s204 + $0x10] sm:$0xff] %v196
    %s208 = scalar_lea.vmem [#allocation6], 120
    %209 = vst [vmem:[%s208] sm:$0xff] %v197
    %210 = vst [vmem:[%s208 + $0x8] sm:$0xff] %v198
    %211 = vst [vmem:[%s208 + $0x10] sm:$0xff] %v199
    %v212 = vmul.f32 %v191, 100.0
    %v213 = vmul.f32 %v192, 100.0
    %v214 = vmul.f32 %v193, 100.0
    %v215 = vadd.f32 %v125, %v212
    %v216 = vadd.f32 %v126, %v213
    %v217 = vadd.f32 %v127, %v214
    %v218 = vmul.f32 %v194, 100.0
    %v219 = vmul.f32 %v195, 100.0
    %v220 = vmul.f32 %v196, 100.0
    %v221 = vadd.f32 %v131, %v218
    %v222 = vadd.f32 %v132, %v219
    %v223 = vadd.f32 %v133, %v220
    %v224 = vmul.f32 %v197, 100.0
    %v225 = vmul.f32 %v198, 100.0
    %v226 = vmul.f32 %v199, 100.0
    %v227 = vadd.f32 %v137, %v224
    %v228 = vadd.f32 %v138, %v225
    %v229 = vadd.f32 %v139, %v226
    %v230 = vmul.f32 %v50, %v215
    %v231 = vmul.f32 %v50, %v216
    %v232 = vmul.f32 %v50, %v217
    %v233 = vmul.f32 %v50, %v221
    %v234 = vmul.f32 %v50, %v222
    %v235 = vmul.f32 %v50, %v223
    %v236 = vmul.f32 %v50, %v227
    %v237 = vmul.f32 %v50, %v228
    %v238 = vmul.f32 %v50, %v229
    %v239 = vmax.f32 %v230, %v233
    %v240 = vmax.f32 %v231, %v234
    %v241 = vmax.f32 %v232, %v235
    %v242 = vmax.f32 %v239, %v236
    %v243 = vmax.f32 %v240, %v237
    %v244 = vmax.f32 %v241, %v238
    %v245 = vsub.f32 %v230, %v242
    %v246 = vsub.f32 %v231, %v243
    %v247 = vsub.f32 %v232, %v244
    %v248 = vmul.f32 %v245, 1.442695
    %v249 = vpow.pop %v248
    %v250 = vmul.f32 %v246, 1.442695
    %v251 = vpow.pop %v250
    %v252 = vmul.f32 %v247, 1.442695
    %v253 = vpow.pop %v252
    %v254 = vsub.f32 %v233, %v242
    %v255 = vsub.f32 %v234, %v243
    %v256 = vsub.f32 %v235, %v244
    %v257 = vmul.f32 %v254, 1.442695
    %v258 = vpow.pop %v257
    %v259 = vmul.f32 %v255, 1.442695
    %v260 = vpow.pop %v259
    %v261 = vmul.f32 %v256, 1.442695
    %v262 = vpow.pop %v261
    %v263 = vsub.f32 %v236, %v242
    %v264 = vsub.f32 %v237, %v243
    %v265 = vsub.f32 %v238, %v244
    %v266 = vmul.f32 %v263, 1.442695
    %v267 = vpow.pop %v266
    %v268 = vmul.f32 %v264, 1.442695
    %v269 = vpow.pop %v268
    %v270 = vmul.f32 %v265, 1.442695
    %v271 = vpow.pop %v270
    %v272 = vadd.f32 %v249, %v258
    %v273 = vadd.f32 %v251, %v260
    %v274 = vadd.f32 %v253, %v262
    %v275 = vadd.f32 %v272, %v267
    %v276 = vadd.f32 %v273, %v269
    %v277 = vadd.f32 %v274, %v271
    %v278 = vrcp.pop %v275
    %v279 = vrcp.pop %v276
    %v280 = vrcp.pop %v277
    %v281 = vmul.f32 %v249, %v278
    %v282 = vmul.f32 %v251, %v279
    %v283 = vmul.f32 %v253, %v280
    %v284 = vmul.f32 %v258, %v278
    %v285 = vmul.f32 %v260, %v279
    %v286 = vmul.f32 %v262, %v280
    %v287 = vmul.f32 %v267, %v278
    %v288 = vmul.f32 %v269, %v279
    %v289 = vmul.f32 %v271, %v280
    %s290 = scalar_lea.vmem [#allocation6], 144
    %291 = vst [vmem:[%s290] sm:$0xff] %v281
    %292 = vst [vmem:[%s290 + $0x8] sm:$0xff] %v282
    %293 = vst [vmem:[%s290 + $0x10] sm:$0xff] %v283
    %s294 = scalar_lea.vmem [#allocation6], 168
    %295 = vst [vmem:[%s294] sm:$0xff] %v284
    %296 = vst [vmem:[%s294 + $0x8] sm:$0xff] %v285
    %297 = vst [vmem:[%s294 + $0x10] sm:$0xff] %v286
    %s298 = scalar_lea.vmem [#allocation6], 192
    %299 = vst [vmem:[%s298] sm:$0xff] %v287
    %300 = vst [vmem:[%s298 + $0x8] sm:$0xff] %v288
    %301 = vst [vmem:[%s298 + $0x10] sm:$0xff] %v289
    // Predicated region
    $region14: #{tpu_custom_call.1} parent=1 // pred_check
      _
    $region15: #{tpu_custom_call.1} parent=1 // pred_check_branch
      %303 = sbr.rel (0) target = $region17
    $region16: #{tpu_custom_call.1} parent=1 // pred_region
      %s305 = ssub.s32 3456, 3456
      %306 = vsyncadd [#allocation5], %s305
      %s307 = sshll.u32 [#allocation6], 4
      %s308 = int_to_ptr.vmem [resolvable:$true] %s307
      %313 = dma.vmem_to_hbm [thread:$0]  %s308, 3456, %s2, [#allocation5], 128, 128, 8
    $region17: #{tpu_custom_call.1} parent=1 // pred_fallthru
      _
    // Predicated region
    $region18: #{tpu_custom_call.1} parent=1 // pred_check
      _
    $region19: #{tpu_custom_call.1} parent=1 // pred_check_branch
      %315 = sbr.rel (0) target = $region21
    $region20: #{tpu_custom_call.1} parent=1 // pred_region
      %316 = dma.done [#allocation5], 3456
    $region21: #{tpu_custom_call.1} parent=1 // pred_fallthru
      _
    %317 = vsyncpa [#allocation4], 1
    %318 = vsyncpa [#allocation5], 1

</llo_original>
